<compile_context>
chip_gen: v7x
topology: tpu7x:2x2x1
jax: 0.10.0
libtpu: 0.0.40
codegen_flags: <defaults>
</compile_context>

<pallas_src>
import functools

import jax
import jax.numpy as jnp
from jax.experimental import pallas as pl
from jax.experimental.pallas import tpu as pltpu


# ----------------------------- Pallas kernel --------------------------------

def _global_filter_kernel(x_ref, df_ref, mb_ref, wr_ref, wi_ref, o_ref, *, fp):
    """Fused rfft2 -> complex filter -> irfft2 for one (channel tile, batch) step.

    x_ref  : (tm, HW)     spatial rows (one row = one (batch, channel))
    df_ref : (HW, 2*fp)   packed [DR | DI] forward real-DFT basis (bf16)
    mb_ref : (2*fp, HW)   packed [[MR],[MI]] inverse basis (bf16)
    wr/wi  : (tm, fp)     per-channel real/imag filter weights (f32)
    o_ref  : (tm, HW)
    """
    x = x_ref[...].astype(jnp.bfloat16)
    # forward 2-D real DFT: single MXU matmul, f32 accumulation
    z = jnp.dot(x, df_ref[...], preferred_element_type=jnp.float32)   # (tm, 2*fp)
    zr = z[:, :fp]          # fp is a multiple of 128 -> lane-tile-aligned slice
    zi = z[:, fp:]
    wr = wr_ref[...]
    wi = wi_ref[...]
    yr = zr * wr - zi * wi
    yi = zr * wi + zi * wr
    y = jnp.concatenate([yr, yi], axis=-1).astype(jnp.bfloat16)       # (tm, 2*fp)
    # inverse transform back to the spatial domain: single MXU matmul + store
    out = jnp.dot(y, mb_ref[...], preferred_element_type=jnp.float32)
    o_ref[...] = out.astype(o_ref.dtype)


# --------------------------- tiling / chip helpers ---------------------------

def _is_multi_tensorcore():
    """True on chips whose TensorCores are fed by splitting 'parallel' grid axes."""
    try:
        kind = jax.devices()[0].device_kind.lower()
    except Exception:
        return False
    if any(s in kind for s in ("lite", "v5e", "v6", "v2", "v3")):
        return False
    return any(s in kind for s in ("v4", "v5", "v7"))


def _pick_channel_tile(channels, multi_tc):
    """Sublane-aligned divisor of C.  Multi-TC chips prefer >= 2 channel blocks."""
    divisors = [d for d in (256, 128, 64, 32, 16, 8) if channels % d == 0]
    if not divisors:
        return channels          # full-dim block (only valid when batch == 1)
    if multi_tc:
        for d in divisors:
            if channels // d >= 2:
                return d
    return divisors[0]


# ------------------------------ pallas_call wrapper ---------------------------

def global_filter_rows(x2d, df, mb, wr, wi, batch, channels):
    """x2d (B*C, HW) -> filtered (B*C, HW), single fused pallas_call."""
    m, hw = x2d.shape
    assert m == batch * channels
    fp = wr.shape[-1]

    tm = _pick_channel_tile(channels, _is_multi_tensorcore())
    if tm % 8 != 0 and batch > 1:
        raise ValueError("channel count must be a multiple of 8 when batch > 1")
    cblocks = channels // tm
    grid = (cblocks, batch)      # batch innermost -> weight tile re-used across batch

    # right-sized VMEM limit: single-buffered bases + double-buffered step tiles
    resident = df.size * df.dtype.itemsize + mb.size * mb.dtype.itemsize
    step = 2 * tm * hw * x2d.dtype.itemsize + 2 * tm * fp * wr.dtype.itemsize
    need = resident + 2 * step + (8 << 20)           # + headroom for Mosaic scratch
    vmem_limit = int(min(max(need, 32 << 20), 48 << 20))

    kernel = functools.partial(_global_filter_kernel, fp=fp)
    return pl.pallas_call(
        kernel,
        out_shape=jax.ShapeDtypeStruct((m, hw), x2d.dtype),
        grid_spec=pltpu.PrefetchScalarGridSpec(
            num_scalar_prefetch=0,
            grid=grid,
            in_specs=[
                pl.BlockSpec((tm, hw), lambda ci, bi: (bi * cblocks + ci, 0)),
                pl.BlockSpec((hw, 2 * fp), lambda ci, bi: (0, 0),
                             pipeline_mode=pl.Buffered(1)),   # resident forward basis
                pl.BlockSpec((2 * fp, hw), lambda ci, bi: (0, 0),
                             pipeline_mode=pl.Buffered(1)),   # resident inverse basis
                pl.BlockSpec((tm, fp), lambda ci, bi: (ci, 0)),   # weight real (per C)
                pl.BlockSpec((tm, fp), lambda ci, bi: (ci, 0)),   # weight imag (per C)
            ],
            out_specs=pl.BlockSpec((tm, hw), lambda ci, bi: (bi * cblocks + ci, 0)),
        ),
        compiler_params=pltpu.CompilerParams(
            dimension_semantics=("parallel", "arbitrary"),
            vmem_limit_bytes=vmem_limit,
        ),
    )(x2d, df, mb, wr, wi)


# ------------------------- DFT basis + parameters ---------------------------

def _round_up(v, mult):
    return ((v + mult - 1) // mult) * mult


def make_dft_matrices(h, w):
    """Packed real matrices realizing rfft2 / irfft2 over (H, W), norm='ortho'.

    Built by pushing delta bases through jnp.fft so every convention (half
    spectrum along W, hermitian DC/Nyquist handling) matches torch.fft.  The
    frequency axis is zero-padded to a multiple of 128 (exact: pads are zero)
    and the real/imag halves are packed so the kernel needs only two matmuls.
    """
    wf = w // 2 + 1
    hw, hwf = h * w, h * wf
    fp = max(128, _round_up(hwf, 128))
    pad = fp - hwf

    eye = jnp.eye(hw, dtype=jnp.float32).reshape(hw, h, w)
    fwd = jnp.fft.rfft2(eye, axes=(1, 2), norm="ortho").reshape(hw, hwf)
    dr = jnp.pad(jnp.real(fwd).astype(jnp.float32), ((0, 0), (0, pad)))
    di = jnp.pad(jnp.imag(fwd).astype(jnp.float32), ((0, 0), (0, pad)))

    eyec = jnp.eye(hwf, dtype=jnp.complex64).reshape(hwf, h, wf)
    mr = jnp.fft.irfft2(eyec, s=(h, w), axes=(1, 2),
                        norm="ortho").reshape(hwf, hw).astype(jnp.float32)
    mi = jnp.fft.irfft2(1j * eyec, s=(h, w), axes=(1, 2),
                        norm="ortho").reshape(hwf, hw).astype(jnp.float32)
    mr = jnp.pad(mr, ((0, pad), (0, 0)))
    mi = jnp.pad(mi, ((0, pad), (0, 0)))

    df = jnp.concatenate([dr, di], axis=1).astype(jnp.bfloat16)   # (HW, 2*fp)
    mb = jnp.concatenate([mr, mi], axis=0).astype(jnp.bfloat16)   # (2*fp, HW)
    return df, mb, hwf, fp


def init_global_filter(key, dim, h, w):
    """Mirror of GlobalFilter.__init__ (learned weight shape (H, W//2+1, dim, 2))."""
    wf = w // 2 + 1
    cw = 0.02 * jax.random.normal(key, (h, wf, dim, 2), jnp.float32)
    df, mb, hwf, fp = make_dft_matrices(h, w)
    # learned complex weight -> per-channel rows over the (padded) freq axis, f32
    wr = jnp.transpose(cw[..., 0], (2, 0, 1)).reshape(dim, hwf)
    wi = jnp.transpose(cw[..., 1], (2, 0, 1)).reshape(dim, hwf)
    wr = jnp.pad(wr, ((0, 0), (0, fp - hwf)))
    wi = jnp.pad(wi, ((0, 0), (0, fp - hwf)))
    return {
        "complex_weight": cw,            # kept for the pure-jnp reference path
        "df": df, "mb": mb, "wr": wr, "wi": wi,
    }


# ------------------------------ forward pass ---------------------------------

def global_filter(params, x_nchw):
    """Forward pass equivalent to GlobalFilter.forward (fp32fft=True)."""
    b, c, h, w = x_nchw.shape
    # rows = (batch, channel), cols = flattened spatial -> no transposes needed;
    # x keeps its dtype across the boundary, f32 math happens in-kernel.
    x2d = x_nchw.reshape(b * c, h * w)
    y2d = global_filter_rows(x2d, params["df"], params["mb"],
                             params["wr"], params["wi"], b, c)
    return y2d.reshape(b, c, h, w)


def reference_global_filter(params, x_nchw):
    """Plain jnp.fft mirror of the PyTorch module, for correctness checking."""
    b, c, h, w = x_nchw.shape
    x = jnp.transpose(x_nchw, (0, 2, 3, 1)).astype(jnp.float32)
    xf = jnp.fft.rfft2(x, axes=(1, 2), norm="ortho")
    cw = params["complex_weight"]
    weight = cw[..., 0] + 1j * cw[..., 1]               # (H, W//2+1, C)
    y = jnp.fft.irfft2(xf * weight[None], s=(h, w), axes=(1, 2), norm="ortho")
    return jnp.transpose(y, (0, 3, 1, 2)).astype(x_nchw.dtype)


# --------------------------------- main ---------------------------------------

if __name__ == "__main__":
    key = jax.random.PRNGKey(0)
    wkey, xkey = jax.random.split(key)

    # GlobalFilter(dim=32, h=16, w=9) acting on 16x16 feature maps
    B, C, H, W = 2, 32, 16, 16
    params = init_global_filter(wkey, C, H, W)
    x = jax.random.normal(xkey, (B, C, H, W), jnp.float32)

    fwd = jax.jit(global_filter)
    out = jax.block_until_ready(fwd(params, x))
    assert out.shape == (B, C, H, W)
    assert bool(jnp.all(jnp.isfinite(out)))

    # cross-check the fused Pallas kernel against the direct jnp.fft reference.
    # bf16 MXU operands with f32 accumulation -> expected relative error ~3e-3.
    ref = jax.block_until_ready(reference_global_filter(params, x))
    rel = jnp.linalg.norm((out - ref).astype(jnp.float32)) / (
        jnp.linalg.norm(ref.astype(jnp.float32)) + 1e-12)
    assert float(rel) < 1e-2, f"relative error {float(rel):.3e} too large"
    print("KERNEL_OK")
</pallas_src>

<mosaic_0001>
module attributes {stable_mosaic.version = 11 : i64} {
  func.func @_global_filter_kernel(%arg0: i32, %arg1: i32, %arg2: memref<32x256xf32, #tpu.memory_space<vmem>>, %arg3: memref<256x512xbf16, #tpu.memory_space<vmem>>, %arg4: memref<512x256xbf16, #tpu.memory_space<vmem>>, %arg5: memref<32x256xf32, #tpu.memory_space<vmem>>, %arg6: memref<32x256xf32, #tpu.memory_space<vmem>>, %arg7: memref<32x256xf32, #tpu.memory_space<vmem>>) attributes {dimension_semantics = [#tpu.dimension_semantics<parallel>, #tpu.dimension_semantics<arbitrary>], iteration_bounds = array<i64: 1, 2>, scalar_prefetch = 0 : i64, scratch_operands = 0 : i64, tpu.core_type = #tpu.core_type<tc>, window_params = [{transform_indices = @transform_0, window_bounds = array<i64: 32, 256>}, {pipeline_mode = #tpu.pipeline_mode<synchronous>, transform_indices = @transform_1, window_bounds = array<i64: 256, 512>}, {pipeline_mode = #tpu.pipeline_mode<synchronous>, transform_indices = @transform_2, window_bounds = array<i64: 512, 256>}, {transform_indices = @transform_3, window_bounds = array<i64: 32, 256>}, {transform_indices = @transform_4, window_bounds = array<i64: 32, 256>}, {transform_indices = @transform_5, window_bounds = array<i64: 32, 256>}]} {
    %c0 = arith.constant 0 : index
    %c0_0 = arith.constant 0 : index
    %0 = vector.load %arg2[%c0, %c0_0] : memref<32x256xf32, #tpu.memory_space<vmem>>, vector<32x256xf32>
    %1 = arith.truncf %0 : vector<32x256xf32> to vector<32x256xbf16>
    %c0_1 = arith.constant 0 : index
    %c0_2 = arith.constant 0 : index
    %2 = vector.load %arg3[%c0_1, %c0_2] : memref<256x512xbf16, #tpu.memory_space<vmem>>, vector<256x512xbf16>
    %cst = arith.constant dense<0.000000e+00> : vector<32x512xf32>
    %3 = tpu.matmul %1, %2, %cst {dimension_numbers = #tpu.dot_dimension_numbers<[1], [0], [0], [1], [0, 0, 1, 1], [], []>} : vector<32x256xbf16>, vector<256x512xbf16>, vector<32x512xf32> -> vector<32x512xf32>
    %4 = vector.extract_strided_slice %3 {offsets = [0, 0], sizes = [32, 256], strides = [1, 1]} : vector<32x512xf32> to vector<32x256xf32>
    %5 = vector.extract_strided_slice %3 {offsets = [0, 256], sizes = [32, 256], strides = [1, 1]} : vector<32x512xf32> to vector<32x256xf32>
    %c0_3 = arith.constant 0 : index
    %c0_4 = arith.constant 0 : index
    %6 = vector.load %arg5[%c0_3, %c0_4] : memref<32x256xf32, #tpu.memory_space<vmem>>, vector<32x256xf32>
    %c0_5 = arith.constant 0 : index
    %c0_6 = arith.constant 0 : index
    %7 = vector.load %arg6[%c0_5, %c0_6] : memref<32x256xf32, #tpu.memory_space<vmem>>, vector<32x256xf32>
    %8 = arith.mulf %4, %6 : vector<32x256xf32>
    %9 = arith.mulf %5, %7 : vector<32x256xf32>
    %10 = arith.subf %8, %9 : vector<32x256xf32>
    %11 = arith.mulf %4, %7 : vector<32x256xf32>
    %12 = arith.mulf %5, %6 : vector<32x256xf32>
    %13 = arith.addf %11, %12 : vector<32x256xf32>
    %14 = tpu.concatenate %10, %13 in 1 : vector<32x256xf32>, vector<32x256xf32> -> vector<32x512xf32>
    %15 = arith.truncf %14 : vector<32x512xf32> to vector<32x512xbf16>
    %c0_7 = arith.constant 0 : index
    %c0_8 = arith.constant 0 : index
    %16 = vector.load %arg4[%c0_7, %c0_8] : memref<512x256xbf16, #tpu.memory_space<vmem>>, vector<512x256xbf16>
    %cst_9 = arith.constant dense<0.000000e+00> : vector<32x256xf32>
    %17 = tpu.matmul %15, %16, %cst_9 {dimension_numbers = #tpu.dot_dimension_numbers<[1], [0], [0], [1], [0, 0, 1, 1], [], []>} : vector<32x512xbf16>, vector<512x256xbf16>, vector<32x256xf32> -> vector<32x256xf32>
    %c0_10 = arith.constant 0 : index
    %c0_11 = arith.constant 0 : index
    %18 = vector.load %arg7[%c0_10, %c0_11] : memref<32x256xf32, #tpu.memory_space<vmem>>, vector<32x256xf32>
    tpu.vector_store %arg7[%c0_10, %c0_11], %17 {strides = array<i32>} : memref<32x256xf32, #tpu.memory_space<vmem>>, vector<32x256xf32>,
    return
  }
  func.func @transform_0(%arg0: i32, %arg1: i32) -> (i32, i32) {
    %c1_i32 = arith.constant 1 : i32
    %0 = arith.muli %arg1, %c1_i32 : i32
    %1 = arith.addi %0, %arg0 : i32
    %c0_i32 = arith.constant 0 : i32
    %c0_i32_0 = arith.constant 0 : i32
    return %1, %c0_i32 : i32, i32
  }
  func.func @transform_1(%arg0: i32, %arg1: i32) -> (i32, i32) {
    %c0_i32 = arith.constant 0 : i32
    %c0_i32_0 = arith.constant 0 : i32
    %c0_i32_1 = arith.constant 0 : i32
    return %c0_i32, %c0_i32_0 : i32, i32
  }
  func.func @transform_2(%arg0: i32, %arg1: i32) -> (i32, i32) {
    %c0_i32 = arith.constant 0 : i32
    %c0_i32_0 = arith.constant 0 : i32
    %c0_i32_1 = arith.constant 0 : i32
    return %c0_i32, %c0_i32_0 : i32, i32
  }
  func.func @transform_3(%arg0: i32, %arg1: i32) -> (i32, i32) {
    %c0_i32 = arith.constant 0 : i32
    %c0_i32_0 = arith.constant 0 : i32
    return %arg0, %c0_i32 : i32, i32
  }
  func.func @transform_4(%arg0: i32, %arg1: i32) -> (i32, i32) {
    %c0_i32 = arith.constant 0 : i32
    %c0_i32_0 = arith.constant 0 : i32
    return %arg0, %c0_i32 : i32, i32
  }
  func.func @transform_5(%arg0: i32, %arg1: i32) -> (i32, i32) {
    %c1_i32 = arith.constant 1 : i32
    %0 = arith.muli %arg1, %c1_i32 : i32
    %1 = arith.addi %0, %arg0 : i32
    %c0_i32 = arith.constant 0 : i32
    %c0_i32_0 = arith.constant 0 : i32
    return %1, %c0_i32 : i32, i32
  }
}

</mosaic_0001>

<llo_original>
// kernel: global_filter.1
$region0: #{global_filter.1}
  #allocation0 [shape = 'u32[]', space=smem, size = 0x4, offset = 0x4, fixed_abs, tag = 'smem constant byte address 0x4 - core index']
  #allocation1 [shape = 'u32[144,128]{1,0:T(1,128)}', space=vmem, size = 0x12000, scoped, tag = 'internal scratch']
  %s0 = inlined_call_operand.vmem [shape: f32[64,256], index: 0, kind: input, shape index: {}]
  %s1 = inlined_call_operand.vmem [shape: bf16[256,512], index: 1, kind: input, shape index: {}]
  %s2 = inlined_call_operand.vmem [shape: bf16[512,256], index: 2, kind: input, shape index: {}]
  %s3 = inlined_call_operand.vmem [shape: f32[32,256], index: 3, kind: input, shape index: {}]
  %s4 = inlined_call_operand.vmem [shape: f32[32,256], index: 4, kind: input, shape index: {}]
  %s5 = inlined_call_operand.vmem [shape: f32[64,256], index: 5, kind: output, shape index: {}]
  %s6 = sld [smem:[#allocation0]]
  $region53: #{global_filter.1} parent=0
    _
  %s8 = ssub.s32 1, %s6
  %s9 = scalar_select 0, %s8, %s6
  loop: start=0, step=1, limit=4
  $region2: #{global_filter.1} parent=0 // loop_pre_header
    _
  $region3: #{global_filter.1} parent=0 // loop_header
    %s11 = sphi 0, %s15
    %p12 = scmp.ge.s32.totalorder %s11, 4
    %s18 = sphi 0, %s30
    %s19 = sphi 0, %s26
    %s20 = sphi 0, %s18
    %s21 = sphi 0, %s19
    %s22 = sphi 0, %s20
    %s23 = sphi 0, %s21
    %s35 = sphi 0, %s37
    %s38 = sphi 0, %s35
    %s39 = sphi 0, %s38
    %s55 = sphi 0, %s39
    %s59 = sphi 0, %s59
    %s61 = sphi 0, %s59
    %s62 = sphi 0, %s61
    %s76 = sphi 0, %s62
    %s80 = sphi 0, %s80
    %s82 = sphi 0, %s80
    %s83 = sphi 0, %s82
    %s97 = sphi 0, %s83
    %s103 = sphi 0, %s105
    %s106 = sphi 0, %s103
    %s107 = sphi 0, %s106
    %s123 = sphi 0, %s107
    %s129 = sphi 0, %s131
    %s132 = sphi 0, %s129
    %s133 = sphi 0, %s132
    %s149 = sphi 0, %s133
    %s157 = sphi 0, %s159
    %s160 = sphi 0, %s157
    %s161 = sphi 0, %s160
    %s177 = sphi 0, %s161
  $region4: #{global_filter.1} parent=0 // loop_header_branch
    %14 = sbr.rel (%p12) target = $region8
  $region5: #{global_filter.1} parent=0 // loop_body
    %s16 = ssub.s32 %s11, 1
    %s17 = ssub.s32 %s11, 2
    %s24 = sadd.s32 1, %s19
    %p25 = scmp.ge.s32.totalorder %s24, 2
    %s26 = scalar_select %p25, 0, %s24
    %s27 = sadd.s32 1, %s18
    %s28 = scalar_select %p25, %s27, %s18
    %p29 = scmp.ge.s32.totalorder %s28, 1
    %s30 = scalar_select %p29, 0, %s28
    %s31 = sadd.s32 %s19, %s18
    %s32 = sadd.s32 %s26, %s30
    %s33 = ssub.s32 %s31, %s32
    %p34 = scmp.eq.s32.totalorder %s33, 0
    %s36 = sadd.s32 %s35, 1
    %s37 = scalar_select %p34, %s35, %s36
    %p40 = pneg %p34
    %p41 = scmp.eq.s32.totalorder %s11, 1
    %p42 = por %p40, %p41
    %p43 = scmp.ne.s32.totalorder %s35, %s38
    %p44 = scmp.eq.s32.totalorder %s11, 0
    %p45 = por %p43, %p44
    %p46 = scmp.ne.s32.totalorder %s35, %s38
    %p47 = scmp.eq.s32.totalorder %s16, 1
    %p48 = por %p46, %p47
    %p49 = scmp.ne.s32.totalorder %s38, %s39
    %p50 = scmp.eq.s32.totalorder %s16, 0
    %p51 = por %p49, %p50
    %p52 = scmp.ne.s32.totalorder %s38, %s39
    %p53 = scmp.eq.s32.totalorder %s17, 1
    %p54 = por %p52, %p53
    %p56 = scmp.ne.s32.totalorder %s39, %s55
    %p57 = scmp.eq.s32.totalorder %s17, 0
    %p58 = por %p56, %p57
    %s60 = sadd.s32 %s59, 1
    %p63 = scmp.eq.s32.totalorder %s11, 1
    %p64 = scmp.ne.s32.totalorder %s59, %s61
    %p65 = scmp.eq.s32.totalorder %s11, 0
    %p66 = por %p64, %p65
    %p67 = scmp.ne.s32.totalorder %s59, %s61
    %p68 = scmp.eq.s32.totalorder %s16, 1
    %p69 = por %p67, %p68
    %p70 = scmp.ne.s32.totalorder %s61, %s62
    %p71 = scmp.eq.s32.totalorder %s16, 0
    %p72 = por %p70, %p71
    %p73 = scmp.ne.s32.totalorder %s61, %s62
    %p74 = scmp.eq.s32.totalorder %s17, 1
    %p75 = por %p73, %p74
    %p77 = scmp.ne.s32.totalorder %s62, %s76
    %p78 = scmp.eq.s32.totalorder %s17, 0
    %p79 = por %p77, %p78
    %s81 = sadd.s32 %s80, 1
    %p84 = scmp.eq.s32.totalorder %s11, 1
    %p85 = scmp.ne.s32.totalorder %s80, %s82
    %p86 = scmp.eq.s32.totalorder %s11, 0
    %p87 = por %p85, %p86
    %p88 = scmp.ne.s32.totalorder %s80, %s82
    %p89 = scmp.eq.s32.totalorder %s16, 1
    %p90 = por %p88, %p89
    %p91 = scmp.ne.s32.totalorder %s82, %s83
    %p92 = scmp.eq.s32.totalorder %s16, 0
    %p93 = por %p91, %p92
    %p94 = scmp.ne.s32.totalorder %s82, %s83
    %p95 = scmp.eq.s32.totalorder %s17, 1
    %p96 = por %p94, %p95
    %p98 = scmp.ne.s32.totalorder %s83, %s97
    %p99 = scmp.eq.s32.totalorder %s17, 0
    %p100 = por %p98, %p99
    %s101 = ssub.s32 %s18, %s30
    %p102 = scmp.eq.s32.totalorder %s101, 0
    %s104 = sadd.s32 %s103, 1
    %s105 = scalar_select %p102, %s103, %s104
    %p108 = pneg %p102
    %p109 = scmp.eq.s32.totalorder %s11, 1
    %p110 = por %p108, %p109
    %p111 = scmp.ne.s32.totalorder %s103, %s106
    %p112 = scmp.eq.s32.totalorder %s11, 0
    %p113 = por %p111, %p112
    %p114 = scmp.ne.s32.totalorder %s103, %s106
    %p115 = scmp.eq.s32.totalorder %s16, 1
    %p116 = por %p114, %p115
    %p117 = scmp.ne.s32.totalorder %s106, %s107
    %p118 = scmp.eq.s32.totalorder %s16, 0
    %p119 = por %p117, %p118
    %p120 = scmp.ne.s32.totalorder %s106, %s107
    %p121 = scmp.eq.s32.totalorder %s17, 1
    %p122 = por %p120, %p121
    %p124 = scmp.ne.s32.totalorder %s107, %s123
    %p125 = scmp.eq.s32.totalorder %s17, 0
    %p126 = por %p124, %p125
    %s127 = ssub.s32 %s18, %s30
    %p128 = scmp.eq.s32.totalorder %s127, 0
    %s130 = sadd.s32 %s129, 1
    %s131 = scalar_select %p128, %s129, %s130
    %p134 = pneg %p128
    %p135 = scmp.eq.s32.totalorder %s11, 1
    %p136 = por %p134, %p135
    %p137 = scmp.ne.s32.totalorder %s129, %s132
    %p138 = scmp.eq.s32.totalorder %s11, 0
    %p139 = por %p137, %p138
    %p140 = scmp.ne.s32.totalorder %s129, %s132
    %p141 = scmp.eq.s32.totalorder %s16, 1
    %p142 = por %p140, %p141
    %p143 = scmp.ne.s32.totalorder %s132, %s133
    %p144 = scmp.eq.s32.totalorder %s16, 0
    %p145 = por %p143, %p144
    %p146 = scmp.ne.s32.totalorder %s132, %s133
    %p147 = scmp.eq.s32.totalorder %s17, 1
    %p148 = por %p146, %p147
    %p150 = scmp.ne.s32.totalorder %s133, %s149
    %p151 = scmp.eq.s32.totalorder %s17, 0
    %p152 = por %p150, %p151
    %s153 = sadd.s32 %s19, %s18
    %s154 = sadd.s32 %s26, %s30
    %s155 = ssub.s32 %s153, %s154
    %p156 = scmp.eq.s32.totalorder %s155, 0
    %s158 = sadd.s32 %s157, 1
    %s159 = scalar_select %p156, %s157, %s158
    %p162 = pneg %p156
    %p163 = scmp.eq.s32.totalorder %s11, 1
    %p164 = por %p162, %p163
    %p165 = scmp.ne.s32.totalorder %s157, %s160
    %p166 = scmp.eq.s32.totalorder %s11, 0
    %p167 = por %p165, %p166
    %p168 = scmp.ne.s32.totalorder %s157, %s160
    %p169 = scmp.eq.s32.totalorder %s16, 1
    %p170 = por %p168, %p169
    %p171 = scmp.ne.s32.totalorder %s160, %s161
    %p172 = scmp.eq.s32.totalorder %s16, 0
    %p173 = por %p171, %p172
    %p174 = scmp.ne.s32.totalorder %s160, %s161
    %p175 = scmp.eq.s32.totalorder %s17, 1
    %p176 = por %p174, %p175
    %p178 = scmp.ne.s32.totalorder %s161, %s177
    %p179 = scmp.eq.s32.totalorder %s17, 0
    %p180 = por %p178, %p179
    %p181 = scmp.le.s32.totalorder 1, %s11
    %p182 = scmp.lt.s32.totalorder %s11, 3
    %p183 = pnand %p181, %p182
    %p184 = pneg %p183
    // Predicated region
    $region9: #{global_filter.1} parent=5 // pred_check
      _
    $region10: #{global_filter.1} parent=5 // pred_check_branch
      %186 = sbr.rel (%p183) target = $region12
    $region11: #{global_filter.1} parent=5 // pred_region
      %s187 = ssub.s32 %s11, 1
      // Predicated region
      $region13: #{global_filter.1} parent=11 // pred_check
        %p188 = pneg %p72
      $region14: #{global_filter.1} parent=11 // pred_check_branch
        %190 = sbr.rel (%p188) target = $region16
      $region15: #{global_filter.1} parent=11 // pred_region
        _
      $region16: #{global_filter.1} parent=11 // pred_fallthru
        _
      // Predicated region
      $region17: #{global_filter.1} parent=11 // pred_check
        %p191 = pneg %p93
      $region18: #{global_filter.1} parent=11 // pred_check_branch
        %193 = sbr.rel (%p191) target = $region20
      $region19: #{global_filter.1} parent=11 // pred_region
        _
      $region20: #{global_filter.1} parent=11 // pred_fallthru
        _
      // Predicated region
      $region21: #{global_filter.1} parent=11 // pred_check
        %p194 = pneg %p119
      $region22: #{global_filter.1} parent=11 // pred_check_branch
        %196 = sbr.rel (%p194) target = $region24
      $region23: #{global_filter.1} parent=11 // pred_region
        %s197 = smul.u32 4, %s20
        %p198 = scmp.lt.s32.totalorder %s197, 3
        %s199 = scalar_select %p198, %s197, 3
        %s200 = smul.addr %s199, 2
        %s201 = smul.addr %s200, 8
        %s202 = scalar_lea.vmem %s3, %s201
        %s203 = smul.u32 4, %s20
      $region24: #{global_filter.1} parent=11 // pred_fallthru
        _
      // Predicated region
      $region25: #{global_filter.1} parent=11 // pred_check
        %p204 = pneg %p145
      $region26: #{global_filter.1} parent=11 // pred_check_branch
        %206 = sbr.rel (%p204) target = $region28
      $region27: #{global_filter.1} parent=11 // pred_region
        %s207 = smul.u32 4, %s20
        %p208 = scmp.lt.s32.totalorder %s207, 3
        %s209 = scalar_select %p208, %s207, 3
        %s210 = smul.addr %s209, 2
        %s211 = smul.addr %s210, 8
        %s212 = scalar_lea.vmem %s4, %s211
        %s213 = smul.u32 4, %s20
      $region28: #{global_filter.1} parent=11 // pred_fallthru
        _
    $region12: #{global_filter.1} parent=5 // pred_fallthru
      _
    %p214 = scmp.lt.s32.totalorder %s11, 2
    // Predicated region
    $region29: #{global_filter.1} parent=5 // pred_check
      %p215 = pneg %p214
    $region30: #{global_filter.1} parent=5 // pred_check_branch
      %217 = sbr.rel (%p215) target = $region32
    $region31: #{global_filter.1} parent=5 // pred_region
      // Predicated region
      $region33: #{global_filter.1} parent=31 // pred_check
        %p218 = pneg %p45
      $region34: #{global_filter.1} parent=31 // pred_check_branch
        %220 = sbr.rel (%p218) target = $region36
      $region35: #{global_filter.1} parent=31 // pred_region
        %s221 = sadd.s32 %s19, %s18
        %s222 = smul.u32 4, %s221
        %p223 = scmp.lt.s32.totalorder %s222, 7
        %s224 = scalar_select %p223, %s222, 7
        %s225 = smul.addr %s224, 2
        %s226 = smul.addr %s225, 8
        %s227 = scalar_lea.vmem %s0, %s226
        %s228 = sadd.s32 %s19, %s18
        %s229 = smul.u32 4, %s228
      $region36: #{global_filter.1} parent=31 // pred_fallthru
        _
    $region32: #{global_filter.1} parent=5 // pred_fallthru
      _
    %p230 = scmp.le.s32.totalorder 1, %s11
    %p231 = scmp.lt.s32.totalorder %s11, 3
    %p232 = pnand %p230, %p231
    %p233 = pneg %p232
    // Predicated region
    $region37: #{global_filter.1} parent=5 // pred_check
      _
    $region38: #{global_filter.1} parent=5 // pred_check_branch
      %235 = sbr.rel (%p232) target = $region40
    $region39: #{global_filter.1} parent=5 // pred_region
      %s236 = ssub.s32 %s11, 1
      %s237 = sadd.s32 %s21, %s20
      %s238 = smul.u32 4, %s237
      %p239 = scmp.lt.s32.totalorder %s238, 7
      %s240 = scalar_select %p239, %s238, 7
      %s241 = smul.addr %s240, 2
      %s242 = smul.addr %s241, 8
      %s243 = scalar_lea.vmem %s0, %s242
      %p244 = pneg %p51
      %p245 = pneg %p48
      %p246 = pneg %p72
      %p247 = pneg %p69
      %p248 = pneg %p93
      %p249 = pneg %p90
      %s250 = smul.u32 4, %s20
      %p251 = scmp.lt.s32.totalorder %s250, 3
      %s252 = scalar_select %p251, %s250, 3
      %s253 = smul.addr %s252, 2
      %s254 = smul.addr %s253, 8
      %s255 = scalar_lea.vmem %s3, %s254
      %p256 = pneg %p119
      %p257 = pneg %p116
      %s258 = smul.u32 4, %s20
      %p259 = scmp.lt.s32.totalorder %s258, 3
      %s260 = scalar_select %p259, %s258, 3
      %s261 = smul.addr %s260, 2
      %s262 = smul.addr %s261, 8
      %s263 = scalar_lea.vmem %s4, %s262
      %p264 = pneg %p145
      %p265 = pneg %p142
      %p266 = pneg %p173
      %p267 = pneg %p170
      %s268 = sadd.s32 %s21, %s20
      %s269 = smul.u32 4, %s268
      %p270 = scmp.lt.s32.totalorder %s269, 7
      %s271 = scalar_select %p270, %s269, 7
      %s272 = smul.addr %s271, 2
      %s273 = smul.addr %s272, 8
      %s274 = scalar_lea.vmem %s5, %s273
      %s275 = sadd.s32 %s21, %s20
      %s276 = smul.u32 4, %s275
      %p277 = scmp.lt.s32.totalorder %s276, 7
      %s278 = scalar_select %p277, %s276, 7
      %s279 = smul.addr %s278, 2
      %s280 = smul.addr %s279, 8
      %s281 = scalar_lea.vmem %s0, %s280
      %s282 = sadd.s32 %s21, %s20
      %s283 = smul.u32 4, %s282
      %s284 = smul.u32 4, %s20
      %p285 = scmp.lt.s32.totalorder %s284, 3
      %s286 = scalar_select %p285, %s284, 3
      %s287 = smul.addr %s286, 2
      %s288 = smul.addr %s287, 8
      %s289 = scalar_lea.vmem %s3, %s288
      %s290 = smul.u32 4, %s20
      %s291 = smul.u32 4, %s20
      %p292 = scmp.lt.s32.totalorder %s291, 3
      %s293 = scalar_select %p292, %s291, 3
      %s294 = smul.addr %s293, 2
      %s295 = smul.addr %s294, 8
      %s296 = scalar_lea.vmem %s4, %s295
      %s297 = smul.u32 4, %s20
      %s298 = sadd.s32 %s21, %s20
      %s299 = smul.u32 4, %s298
      %p300 = scmp.lt.s32.totalorder %s299, 7
      %s301 = scalar_select %p300, %s299, 7
      %s302 = smul.addr %s301, 2
      %s303 = smul.addr %s302, 8
      %s304 = scalar_lea.vmem %s5, %s303
      %s305 = sadd.s32 %s21, %s20
      %s306 = smul.u32 4, %s305
      %v307 = vld [vmem:[%s281] sm:$0xff]
      %v308 = vld [vmem:[%s281 + $0x8] sm:$0xff]
      %v309 = vld [vmem:[%s281 + $0x10] sm:$0xff]
      %v310 = vld [vmem:[%s281 + $0x18] sm:$0xff]
      %v311 = vld [vmem:[%s281 + $0x20] sm:$0xff]
      %v312 = vld [vmem:[%s281 + $0x28] sm:$0xff]
      %v313 = vld [vmem:[%s281 + $0x30] sm:$0xff]
      %v314 = vld [vmem:[%s281 + $0x38] sm:$0xff]
      %v315 = vpack.c.bf16 %v309, %v307
      %v316 = vpack.c.bf16 %v310, %v308
      %v317 = vpack.c.bf16 %v313, %v311
      %v318 = vpack.c.bf16 %v314, %v312
      %v319 = vld [vmem:[%s1] sm:$0xff]
      %v320 = vld [vmem:[%s1 + $0x8] sm:$0xff]
      %v321 = vld [vmem:[%s1 + $0x10] sm:$0xff]
      %v322 = vld [vmem:[%s1 + $0x18] sm:$0xff]
      %v323 = vld [vmem:[%s1 + $0x20] sm:$0xff]
      %v324 = vld [vmem:[%s1 + $0x28] sm:$0xff]
      %v325 = vld [vmem:[%s1 + $0x30] sm:$0xff]
      %v326 = vld [vmem:[%s1 + $0x38] sm:$0xff]
      %v327 = vld [vmem:[%s1 + $0x40] sm:$0xff]
      %v328 = vld [vmem:[%s1 + $0x48] sm:$0xff]
      %v329 = vld [vmem:[%s1 + $0x50] sm:$0xff]
      %v330 = vld [vmem:[%s1 + $0x58] sm:$0xff]
      %v331 = vld [vmem:[%s1 + $0x60] sm:$0xff]
      %v332 = vld [vmem:[%s1 + $0x68] sm:$0xff]
      %v333 = vld [vmem:[%s1 + $0x70] sm:$0xff]
      %v334 = vld [vmem:[%s1 + $0x78] sm:$0xff]
      %v335 = vld [vmem:[%s1 + $0x80] sm:$0xff]
      %v336 = vld [vmem:[%s1 + $0x88] sm:$0xff]
      %v337 = vld [vmem:[%s1 + $0x90] sm:$0xff]
      %v338 = vld [vmem:[%s1 + $0x98] sm:$0xff]
      %v339 = vld [vmem:[%s1 + $0xa0] sm:$0xff]
      %v340 = vld [vmem:[%s1 + $0xa8] sm:$0xff]
      %v341 = vld [vmem:[%s1 + $0xb0] sm:$0xff]
      %v342 = vld [vmem:[%s1 + $0xb8] sm:$0xff]
      %v343 = vld [vmem:[%s1 + $0xc0] sm:$0xff]
      %v344 = vld [vmem:[%s1 + $0xc8] sm:$0xff]
      %v345 = vld [vmem:[%s1 + $0xd0] sm:$0xff]
      %v346 = vld [vmem:[%s1 + $0xd8] sm:$0xff]
      %v347 = vld [vmem:[%s1 + $0xe0] sm:$0xff]
      %v348 = vld [vmem:[%s1 + $0xe8] sm:$0xff]
      %v349 = vld [vmem:[%s1 + $0xf0] sm:$0xff]
      %v350 = vld [vmem:[%s1 + $0xf8] sm:$0xff]
      %v351 = vld [vmem:[%s1 + $0x100] sm:$0xff]
      %v352 = vld [vmem:[%s1 + $0x108] sm:$0xff]
      %v353 = vld [vmem:[%s1 + $0x110] sm:$0xff]
      %v354 = vld [vmem:[%s1 + $0x118] sm:$0xff]
      %v355 = vld [vmem:[%s1 + $0x120] sm:$0xff]
      %v356 = vld [vmem:[%s1 + $0x128] sm:$0xff]
      %v357 = vld [vmem:[%s1 + $0x130] sm:$0xff]
      %v358 = vld [vmem:[%s1 + $0x138] sm:$0xff]
      %v359 = vld [vmem:[%s1 + $0x140] sm:$0xff]
      %v360 = vld [vmem:[%s1 + $0x148] sm:$0xff]
      %v361 = vld [vmem:[%s1 + $0x150] sm:$0xff]
      %v362 = vld [vmem:[%s1 + $0x158] sm:$0xff]
      %v363 = vld [vmem:[%s1 + $0x160] sm:$0xff]
      %v364 = vld [vmem:[%s1 + $0x168] sm:$0xff]
      %v365 = vld [vmem:[%s1 + $0x170] sm:$0xff]
      %v366 = vld [vmem:[%s1 + $0x178] sm:$0xff]
      %v367 = vld [vmem:[%s1 + $0x180] sm:$0xff]
      %v368 = vld [vmem:[%s1 + $0x188] sm:$0xff]
      %v369 = vld [vmem:[%s1 + $0x190] sm:$0xff]
      %v370 = vld [vmem:[%s1 + $0x198] sm:$0xff]
      %v371 = vld [vmem:[%s1 + $0x1a0] sm:$0xff]
      %v372 = vld [vmem:[%s1 + $0x1a8] sm:$0xff]
      %v373 = vld [vmem:[%s1 + $0x1b0] sm:$0xff]
      %v374 = vld [vmem:[%s1 + $0x1b8] sm:$0xff]
      %v375 = vld [vmem:[%s1 + $0x1c0] sm:$0xff]
      %v376 = vld [vmem:[%s1 + $0x1c8] sm:$0xff]
      %v377 = vld [vmem:[%s1 + $0x1d0] sm:$0xff]
      %v378 = vld [vmem:[%s1 + $0x1d8] sm:$0xff]
      %v379 = vld [vmem:[%s1 + $0x1e0] sm:$0xff]
      %v380 = vld [vmem:[%s1 + $0x1e8] sm:$0xff]
      %v381 = vld [vmem:[%s1 + $0x1f0] sm:$0xff]
      %v382 = vld [vmem:[%s1 + $0x1f8] sm:$0xff]
      %v447 = vunpack.c.l.b16 %v319
      %v448 = vunpack.c.h.b16 %v319
      %v449 = vunpack.c.l.b16 %v320
      %v450 = vunpack.c.h.b16 %v320
      %v451 = vunpack.c.l.b16 %v321
      %v452 = vunpack.c.h.b16 %v321
      %v453 = vunpack.c.l.b16 %v322
      %v454 = vunpack.c.h.b16 %v322
      %v455 = vunpack.c.l.b16 %v323
      %v456 = vunpack.c.h.b16 %v323
      %v457 = vunpack.c.l.b16 %v324
      %v458 = vunpack.c.h.b16 %v324
      %v459 = vunpack.c.l.b16 %v325
      %v460 = vunpack.c.h.b16 %v325
      %v461 = vunpack.c.l.b16 %v326
      %v462 = vunpack.c.h.b16 %v326
      %v463 = vunpack.c.l.b16 %v327
      %v464 = vunpack.c.h.b16 %v327
      %v465 = vunpack.c.l.b16 %v328
      %v466 = vunpack.c.h.b16 %v328
      %v467 = vunpack.c.l.b16 %v329
      %v468 = vunpack.c.h.b16 %v329
      %v469 = vunpack.c.l.b16 %v330
      %v470 = vunpack.c.h.b16 %v330
      %v471 = vunpack.c.l.b16 %v331
      %v472 = vunpack.c.h.b16 %v331
      %v473 = vunpack.c.l.b16 %v332
      %v474 = vunpack.c.h.b16 %v332
      %v475 = vunpack.c.l.b16 %v333
      %v476 = vunpack.c.h.b16 %v333
      %v477 = vunpack.c.l.b16 %v334
      %v478 = vunpack.c.h.b16 %v334
      %v479 = vunpack.c.l.b16 %v335
      %v480 = vunpack.c.h.b16 %v335
      %v481 = vunpack.c.l.b16 %v336
      %v482 = vunpack.c.h.b16 %v336
      %v483 = vunpack.c.l.b16 %v337
      %v484 = vunpack.c.h.b16 %v337
      %v485 = vunpack.c.l.b16 %v338
      %v486 = vunpack.c.h.b16 %v338
      %v487 = vunpack.c.l.b16 %v339
      %v488 = vunpack.c.h.b16 %v339
      %v489 = vunpack.c.l.b16 %v340
      %v490 = vunpack.c.h.b16 %v340
      %v491 = vunpack.c.l.b16 %v341
      %v492 = vunpack.c.h.b16 %v341
      %v493 = vunpack.c.l.b16 %v342
      %v494 = vunpack.c.h.b16 %v342
      %v495 = vunpack.c.l.b16 %v343
      %v496 = vunpack.c.h.b16 %v343
      %v497 = vunpack.c.l.b16 %v344
      %v498 = vunpack.c.h.b16 %v344
      %v499 = vunpack.c.l.b16 %v345
      %v500 = vunpack.c.h.b16 %v345
      %v501 = vunpack.c.l.b16 %v346
      %v502 = vunpack.c.h.b16 %v346
      %v503 = vunpack.c.l.b16 %v347
      %v504 = vunpack.c.h.b16 %v347
      %v505 = vunpack.c.l.b16 %v348
      %v506 = vunpack.c.h.b16 %v348
      %v507 = vunpack.c.l.b16 %v349
      %v508 = vunpack.c.h.b16 %v349
      %v509 = vunpack.c.l.b16 %v350
      %v510 = vunpack.c.h.b16 %v350
      %v511 = vunpack.c.l.b16 %v351
      %v512 = vunpack.c.h.b16 %v351
      %v513 = vunpack.c.l.b16 %v352
      %v514 = vunpack.c.h.b16 %v352
      %v515 = vunpack.c.l.b16 %v353
      %v516 = vunpack.c.h.b16 %v353
      %v517 = vunpack.c.l.b16 %v354
      %v518 = vunpack.c.h.b16 %v354
      %v519 = vunpack.c.l.b16 %v355
      %v520 = vunpack.c.h.b16 %v355
      %v521 = vunpack.c.l.b16 %v356
      %v522 = vunpack.c.h.b16 %v356
      %v523 = vunpack.c.l.b16 %v357
      %v524 = vunpack.c.h.b16 %v357
      %v525 = vunpack.c.l.b16 %v358
      %v526 = vunpack.c.h.b16 %v358
      %v527 = vunpack.c.l.b16 %v359
      %v528 = vunpack.c.h.b16 %v359
      %v529 = vunpack.c.l.b16 %v360
      %v530 = vunpack.c.h.b16 %v360
      %v531 = vunpack.c.l.b16 %v361
      %v532 = vunpack.c.h.b16 %v361
      %v533 = vunpack.c.l.b16 %v362
      %v534 = vunpack.c.h.b16 %v362
      %v535 = vunpack.c.l.b16 %v363
      %v536 = vunpack.c.h.b16 %v363
      %v537 = vunpack.c.l.b16 %v364
      %v538 = vunpack.c.h.b16 %v364
      %v539 = vunpack.c.l.b16 %v365
      %v540 = vunpack.c.h.b16 %v365
      %v541 = vunpack.c.l.b16 %v366
      %v542 = vunpack.c.h.b16 %v366
      %v543 = vunpack.c.l.b16 %v367
      %v544 = vunpack.c.h.b16 %v367
      %v545 = vunpack.c.l.b16 %v368
      %v546 = vunpack.c.h.b16 %v368
      %v547 = vunpack.c.l.b16 %v369
      %v548 = vunpack.c.h.b16 %v369
      %v549 = vunpack.c.l.b16 %v370
      %v550 = vunpack.c.h.b16 %v370
      %v551 = vunpack.c.l.b16 %v371
      %v552 = vunpack.c.h.b16 %v371
      %v553 = vunpack.c.l.b16 %v372
      %v554 = vunpack.c.h.b16 %v372
      %v555 = vunpack.c.l.b16 %v373
      %v556 = vunpack.c.h.b16 %v373
      %v557 = vunpack.c.l.b16 %v374
      %v558 = vunpack.c.h.b16 %v374
      %v559 = vunpack.c.l.b16 %v375
      %v560 = vunpack.c.h.b16 %v375
      %v561 = vunpack.c.l.b16 %v376
      %v562 = vunpack.c.h.b16 %v376
      %v563 = vunpack.c.l.b16 %v377
      %v564 = vunpack.c.h.b16 %v377
      %v565 = vunpack.c.l.b16 %v378
      %v566 = vunpack.c.h.b16 %v378
      %v567 = vunpack.c.l.b16 %v379
      %v568 = vunpack.c.h.b16 %v379
      %v569 = vunpack.c.l.b16 %v380
      %v570 = vunpack.c.h.b16 %v380
      %v571 = vunpack.c.l.b16 %v381
      %v572 = vunpack.c.h.b16 %v381
      %v573 = vunpack.c.l.b16 %v382
      %v574 = vunpack.c.h.b16 %v382
      %v575 = vpack.c.b16 %v451, %v447
      %v576 = vpack.c.b16 %v452, %v448
      %v577 = vpack.c.b16 %v453, %v449
      %v578 = vpack.c.b16 %v454, %v450
      %v579 = vpack.c.b16 %v459, %v455
      %v580 = vpack.c.b16 %v460, %v456
      %v581 = vpack.c.b16 %v461, %v457
      %v582 = vpack.c.b16 %v462, %v458
      %v583 = vpack.c.b16 %v467, %v463
      %v584 = vpack.c.b16 %v468, %v464
      %v585 = vpack.c.b16 %v469, %v465
      %v586 = vpack.c.b16 %v470, %v466
      %v587 = vpack.c.b16 %v475, %v471
      %v588 = vpack.c.b16 %v476, %v472
      %v589 = vpack.c.b16 %v477, %v473
      %v590 = vpack.c.b16 %v478, %v474
      %v591 = vpack.c.b16 %v483, %v479
      %v592 = vpack.c.b16 %v484, %v480
      %v593 = vpack.c.b16 %v485, %v481
      %v594 = vpack.c.b16 %v486, %v482
      %v595 = vpack.c.b16 %v491, %v487
      %v596 = vpack.c.b16 %v492, %v488
      %v597 = vpack.c.b16 %v493, %v489
      %v598 = vpack.c.b16 %v494, %v490
      %v599 = vpack.c.b16 %v499, %v495
      %v600 = vpack.c.b16 %v500, %v496
      %v601 = vpack.c.b16 %v501, %v497
      %v602 = vpack.c.b16 %v502, %v498
      %v603 = vpack.c.b16 %v507, %v503
      %v604 = vpack.c.b16 %v508, %v504
      %v605 = vpack.c.b16 %v509, %v505
      %v606 = vpack.c.b16 %v510, %v506
      %v607 = vpack.c.b16 %v515, %v511
      %v608 = vpack.c.b16 %v516, %v512
      %v609 = vpack.c.b16 %v517, %v513
      %v610 = vpack.c.b16 %v518, %v514
      %v611 = vpack.c.b16 %v523, %v519
      %v612 = vpack.c.b16 %v524, %v520
      %v613 = vpack.c.b16 %v525, %v521
      %v614 = vpack.c.b16 %v526, %v522
      %v615 = vpack.c.b16 %v531, %v527
      %v616 = vpack.c.b16 %v532, %v528
      %v617 = vpack.c.b16 %v533, %v529
      %v618 = vpack.c.b16 %v534, %v530
      %v619 = vpack.c.b16 %v539, %v535
      %v620 = vpack.c.b16 %v540, %v536
      %v621 = vpack.c.b16 %v541, %v537
      %v622 = vpack.c.b16 %v542, %v538
      %v623 = vpack.c.b16 %v547, %v543
      %v624 = vpack.c.b16 %v548, %v544
      %v625 = vpack.c.b16 %v549, %v545
      %v626 = vpack.c.b16 %v550, %v546
      %v627 = vpack.c.b16 %v555, %v551
      %v628 = vpack.c.b16 %v556, %v552
      %v629 = vpack.c.b16 %v557, %v553
      %v630 = vpack.c.b16 %v558, %v554
      %v631 = vpack.c.b16 %v563, %v559
      %v632 = vpack.c.b16 %v564, %v560
      %v633 = vpack.c.b16 %v565, %v561
      %v634 = vpack.c.b16 %v566, %v562
      %v635 = vpack.c.b16 %v571, %v567
      %v636 = vpack.c.b16 %v572, %v568
      %v637 = vpack.c.b16 %v573, %v569
      %v638 = vpack.c.b16 %v574, %v570
      %703 = vmatprep.subr.bf16.mxu0 %v576
      %704 = vmatpush1.bf16.msra.mxu0 %v575
      %705 = vmatprep.subr.bf16.mxu0 %v580
      %706 = vmatpush1.bf16.msra.mxu0 %v579
      %707 = vmatprep.subr.bf16.mxu0 %v584
      %708 = vmatpush1.bf16.msra.mxu0 %v583
      %709 = vmatprep.subr.bf16.mxu0 %v588
      %710 = vmatpush1.bf16.msra.mxu0 %v587
      %711 = vmatprep.subr.bf16.mxu0 %v592
      %712 = vmatpush1.bf16.msra.mxu0 %v591
      %713 = vmatprep.subr.bf16.mxu0 %v596
      %714 = vmatpush1.bf16.msra.mxu0 %v595
      %715 = vmatprep.subr.bf16.mxu0 %v600
      %716 = vmatpush1.bf16.msra.mxu0 %v599
      %717 = vmatprep.subr.bf16.mxu0 %v604
      %718 = vmatpush1.bf16.msra.mxu0 %v603
      %719 = vmatprep.subr.bf16.mxu0 %v608
      %720 = vmatpush1.bf16.msra.mxu0 %v607
      %721 = vmatprep.subr.bf16.mxu0 %v612
      %722 = vmatpush1.bf16.msra.mxu0 %v611
      %723 = vmatprep.subr.bf16.mxu0 %v616
      %724 = vmatpush1.bf16.msra.mxu0 %v615
      %725 = vmatprep.subr.bf16.mxu0 %v620
      %726 = vmatpush1.bf16.msra.mxu0 %v619
      %727 = vmatprep.subr.bf16.mxu0 %v624
      %728 = vmatpush1.bf16.msra.mxu0 %v623
      %729 = vmatprep.subr.bf16.mxu0 %v628
      %730 = vmatpush1.bf16.msra.mxu0 %v627
      %731 = vmatprep.subr.bf16.mxu0 %v632
      %732 = vmatpush1.bf16.msra.mxu0 %v631
      %733 = vmatprep.subr.bf16.mxu0 %v636
      %734 = vmatpush1.bf16.msra.mxu0 %v635
      %735 = vmatprep.mubr.bf16.mxu0 %v316
      %736 = vmatmul.mubr.bf16.gmra.mrb[0].mxu0 %v315
      %v737 = vpop.f32.mrb[0].mxu0
      %v738 = vadd.f32 0.0, %v737
      %v739 = vpop.f32.mrb[0].mxu0
      %v740 = vadd.f32 0.0, %v739
      %v741 = vpop.f32.mrb[0].mxu0
      %v742 = vadd.f32 0.0, %v741
      %v743 = vpop.f32.mrb[0].mxu0
      %v744 = vadd.f32 0.0, %v743
      %745 = vmatprep.mubr.bf16.mxu0 %v318
      %746 = vmatmul.mubr.bf16.gmra.mrb[0].mxu0 %v317
      %v747 = vpop.f32.mrb[0].mxu0
      %v748 = vadd.f32 0.0, %v747
      %v749 = vpop.f32.mrb[0].mxu0
      %v750 = vadd.f32 0.0, %v749
      %v751 = vpop.f32.mrb[0].mxu0
      %v752 = vadd.f32 0.0, %v751
      %v753 = vpop.f32.mrb[0].mxu0
      %v754 = vadd.f32 0.0, %v753
      %755 = vdwg.mxu0
      %756 = vmatprep.subr.bf16.mxu0 %v578
      %757 = vmatpush1.bf16.msra.mxu0 %v577
      %758 = vmatprep.subr.bf16.mxu0 %v582
      %759 = vmatpush1.bf16.msra.mxu0 %v581
      %760 = vmatprep.subr.bf16.mxu0 %v586
      %761 = vmatpush1.bf16.msra.mxu0 %v585
      %762 = vmatprep.subr.bf16.mxu0 %v590
      %763 = vmatpush1.bf16.msra.mxu0 %v589
      %764 = vmatprep.subr.bf16.mxu0 %v594
      %765 = vmatpush1.bf16.msra.mxu0 %v593
      %766 = vmatprep.subr.bf16.mxu0 %v598
      %767 = vmatpush1.bf16.msra.mxu0 %v597
      %768 = vmatprep.subr.bf16.mxu0 %v602
      %769 = vmatpush1.bf16.msra.mxu0 %v601
      %770 = vmatprep.subr.bf16.mxu0 %v606
      %771 = vmatpush1.bf16.msra.mxu0 %v605
      %772 = vmatprep.subr.bf16.mxu0 %v610
      %773 = vmatpush1.bf16.msra.mxu0 %v609
      %774 = vmatprep.subr.bf16.mxu0 %v614
      %775 = vmatpush1.bf16.msra.mxu0 %v613
      %776 = vmatprep.subr.bf16.mxu0 %v618
      %777 = vmatpush1.bf16.msra.mxu0 %v617
      %778 = vmatprep.subr.bf16.mxu0 %v622
      %779 = vmatpush1.bf16.msra.mxu0 %v621
      %780 = vmatprep.subr.bf16.mxu0 %v626
      %781 = vmatpush1.bf16.msra.mxu0 %v625
      %782 = vmatprep.subr.bf16.mxu0 %v630
      %783 = vmatpush1.bf16.msra.mxu0 %v629
      %784 = vmatprep.subr.bf16.mxu0 %v634
      %785 = vmatpush1.bf16.msra.mxu0 %v633
      %786 = vmatprep.subr.bf16.mxu0 %v638
      %787 = vmatpush1.bf16.msra.mxu0 %v637
      %788 = vmatprep.mubr.bf16.mxu0 %v316
      %789 = vmatmul.mubr.bf16.gmra.mrb[0].mxu0 %v315
      %v790 = vpop.f32.mrb[0].mxu0
      %v791 = vadd.f32 0.0, %v790
      %v792 = vpop.f32.mrb[0].mxu0
      %v793 = vadd.f32 0.0, %v792
      %v794 = vpop.f32.mrb[0].mxu0
      %v795 = vadd.f32 0.0, %v794
      %v796 = vpop.f32.mrb[0].mxu0
      %v797 = vadd.f32 0.0, %v796
      %798 = vmatprep.mubr.bf16.mxu0 %v318
      %799 = vmatmul.mubr.bf16.gmra.mrb[0].mxu0 %v317
      %v800 = vpop.f32.mrb[0].mxu0
      %v801 = vadd.f32 0.0, %v800
      %v802 = vpop.f32.mrb[0].mxu0
      %v803 = vadd.f32 0.0, %v802
      %v804 = vpop.f32.mrb[0].mxu0
      %v805 = vadd.f32 0.0, %v804
      %v806 = vpop.f32.mrb[0].mxu0
      %v807 = vadd.f32 0.0, %v806
      %808 = vdwg.mxu0
      %v809 = vld [vmem:[%s289] sm:$0xff]
      %v810 = vld [vmem:[%s289 + $0x8] sm:$0xff]
      %v811 = vld [vmem:[%s289 + $0x10] sm:$0xff]
      %v812 = vld [vmem:[%s289 + $0x18] sm:$0xff]
      %v813 = vld [vmem:[%s289 + $0x20] sm:$0xff]
      %v814 = vld [vmem:[%s289 + $0x28] sm:$0xff]
      %v815 = vld [vmem:[%s289 + $0x30] sm:$0xff]
      %v816 = vld [vmem:[%s289 + $0x38] sm:$0xff]
      %v817 = vld [vmem:[%s296] sm:$0xff]
      %v818 = vld [vmem:[%s296 + $0x8] sm:$0xff]
      %v819 = vld [vmem:[%s296 + $0x10] sm:$0xff]
      %v820 = vld [vmem:[%s296 + $0x18] sm:$0xff]
      %v821 = vld [vmem:[%s296 + $0x20] sm:$0xff]
      %v822 = vld [vmem:[%s296 + $0x28] sm:$0xff]
      %v823 = vld [vmem:[%s296 + $0x30] sm:$0xff]
      %v824 = vld [vmem:[%s296 + $0x38] sm:$0xff]
      %v825 = vmul.f32 %v738, %v809
      %v826 = vmul.f32 %v740, %v810
      %v827 = vmul.f32 %v742, %v811
      %v828 = vmul.f32 %v744, %v812
      %v829 = vmul.f32 %v748, %v813
      %v830 = vmul.f32 %v750, %v814
      %v831 = vmul.f32 %v752, %v815
      %v832 = vmul.f32 %v754, %v816
      %v833 = vmul.f32 %v791, %v817
      %v834 = vmul.f32 %v793, %v818
      %v835 = vmul.f32 %v795, %v819
      %v836 = vmul.f32 %v797, %v820
      %v837 = vmul.f32 %v801, %v821
      %v838 = vmul.f32 %v803, %v822
      %v839 = vmul.f32 %v805, %v823
      %v840 = vmul.f32 %v807, %v824
      %v841 = vsub.f32 %v825, %v833
      %v842 = vsub.f32 %v826, %v834
      %v843 = vsub.f32 %v827, %v835
      %v844 = vsub.f32 %v828, %v836
      %v845 = vsub.f32 %v829, %v837
      %v846 = vsub.f32 %v830, %v838
      %v847 = vsub.f32 %v831, %v839
      %v848 = vsub.f32 %v832, %v840
      %v849 = vmul.f32 %v738, %v817
      %v850 = vmul.f32 %v740, %v818
      %v851 = vmul.f32 %v742, %v819
      %v852 = vmul.f32 %v744, %v820
      %v853 = vmul.f32 %v748, %v821
      %v854 = vmul.f32 %v750, %v822
      %v855 = vmul.f32 %v752, %v823
      %v856 = vmul.f32 %v754, %v824
      %v857 = vmul.f32 %v791, %v809
      %v858 = vmul.f32 %v793, %v810
      %v859 = vmul.f32 %v795, %v811
      %v860 = vmul.f32 %v797, %v812
      %v861 = vmul.f32 %v801, %v813
      %v862 = vmul.f32 %v803, %v814
      %v863 = vmul.f32 %v805, %v815
      %v864 = vmul.f32 %v807, %v816
      %v865 = vadd.f32 %v849, %v857
      %v866 = vadd.f32 %v850, %v858
      %v867 = vadd.f32 %v851, %v859
      %v868 = vadd.f32 %v852, %v860
      %v869 = vadd.f32 %v853, %v861
      %v870 = vadd.f32 %v854, %v862
      %v871 = vadd.f32 %v855, %v863
      %v872 = vadd.f32 %v856, %v864
      %v873 = vpack.c.bf16 %v843, %v841
      %v874 = vpack.c.bf16 %v844, %v842
      %v875 = vpack.c.bf16 %v867, %v865
      %v876 = vpack.c.bf16 %v868, %v866
      %v877 = vpack.c.bf16 %v847, %v845
      %v878 = vpack.c.bf16 %v848, %v846
      %v879 = vpack.c.bf16 %v871, %v869
      %v880 = vpack.c.bf16 %v872, %v870
      %v881 = vld [vmem:[%s2] sm:$0xff]
      %v882 = vld [vmem:[%s2 + $0x8] sm:$0xff]
      %v883 = vld [vmem:[%s2 + $0x10] sm:$0xff]
      %v884 = vld [vmem:[%s2 + $0x18] sm:$0xff]
      %v885 = vld [vmem:[%s2 + $0x20] sm:$0xff]
      %v886 = vld [vmem:[%s2 + $0x28] sm:$0xff]
      %v887 = vld [vmem:[%s2 + $0x30] sm:$0xff]
      %v888 = vld [vmem:[%s2 + $0x38] sm:$0xff]
      %v889 = vld [vmem:[%s2 + $0x40] sm:$0xff]
      %v890 = vld [vmem:[%s2 + $0x48] sm:$0xff]
      %v891 = vld [vmem:[%s2 + $0x50] sm:$0xff]
      %v892 = vld [vmem:[%s2 + $0x58] sm:$0xff]
      %v893 = vld [vmem:[%s2 + $0x60] sm:$0xff]
      %v894 = vld [vmem:[%s2 + $0x68] sm:$0xff]
      %v895 = vld [vmem:[%s2 + $0x70] sm:$0xff]
      %v896 = vld [vmem:[%s2 + $0x78] sm:$0xff]
      %v897 = vld [vmem:[%s2 + $0x80] sm:$0xff]
      %v898 = vld [vmem:[%s2 + $0x88] sm:$0xff]
      %v899 = vld [vmem:[%s2 + $0x90] sm:$0xff]
      %v900 = vld [vmem:[%s2 + $0x98] sm:$0xff]
      %v901 = vld [vmem:[%s2 + $0xa0] sm:$0xff]
      %v902 = vld [vmem:[%s2 + $0xa8] sm:$0xff]
      %v903 = vld [vmem:[%s2 + $0xb0] sm:$0xff]
      %v904 = vld [vmem:[%s2 + $0xb8] sm:$0xff]
      %v905 = vld [vmem:[%s2 + $0xc0] sm:$0xff]
      %v906 = vld [vmem:[%s2 + $0xc8] sm:$0xff]
      %v907 = vld [vmem:[%s2 + $0xd0] sm:$0xff]
      %v908 = vld [vmem:[%s2 + $0xd8] sm:$0xff]
      %v909 = vld [vmem:[%s2 + $0xe0] sm:$0xff]
      %v910 = vld [vmem:[%s2 + $0xe8] sm:$0xff]
      %v911 = vld [vmem:[%s2 + $0xf0] sm:$0xff]
      %v912 = vld [vmem:[%s2 + $0xf8] sm:$0xff]
      %v913 = vld [vmem:[%s2 + $0x100] sm:$0xff]
      %v914 = vld [vmem:[%s2 + $0x108] sm:$0xff]
      %v915 = vld [vmem:[%s2 + $0x110] sm:$0xff]
      %v916 = vld [vmem:[%s2 + $0x118] sm:$0xff]
      %v917 = vld [vmem:[%s2 + $0x120] sm:$0xff]
      %v918 = vld [vmem:[%s2 + $0x128] sm:$0xff]
      %v919 = vld [vmem:[%s2 + $0x130] sm:$0xff]
      %v920 = vld [vmem:[%s2 + $0x138] sm:$0xff]
      %v921 = vld [vmem:[%s2 + $0x140] sm:$0xff]
      %v922 = vld [vmem:[%s2 + $0x148] sm:$0xff]
      %v923 = vld [vmem:[%s2 + $0x150] sm:$0xff]
      %v924 = vld [vmem:[%s2 + $0x158] sm:$0xff]
      %v925 = vld [vmem:[%s2 + $0x160] sm:$0xff]
      %v926 = vld [vmem:[%s2 + $0x168] sm:$0xff]
      %v927 = vld [vmem:[%s2 + $0x170] sm:$0xff]
      %v928 = vld [vmem:[%s2 + $0x178] sm:$0xff]
      %v929 = vld [vmem:[%s2 + $0x180] sm:$0xff]
      %v930 = vld [vmem:[%s2 + $0x188] sm:$0xff]
      %v931 = vld [vmem:[%s2 + $0x190] sm:$0xff]
      %v932 = vld [vmem:[%s2 + $0x198] sm:$0xff]
      %v933 = vld [vmem:[%s2 + $0x1a0] sm:$0xff]
      %v934 = vld [vmem:[%s2 + $0x1a8] sm:$0xff]
      %v935 = vld [vmem:[%s2 + $0x1b0] sm:$0xff]
      %v936 = vld [vmem:[%s2 + $0x1b8] sm:$0xff]
      %v937 = vld [vmem:[%s2 + $0x1c0] sm:$0xff]
      %v938 = vld [vmem:[%s2 + $0x1c8] sm:$0xff]
      %v939 = vld [vmem:[%s2 + $0x1d0] sm:$0xff]
      %v940 = vld [vmem:[%s2 + $0x1d8] sm:$0xff]
      %v941 = vld [vmem:[%s2 + $0x1e0] sm:$0xff]
      %v942 = vld [vmem:[%s2 + $0x1e8] sm:$0xff]
      %v943 = vld [vmem:[%s2 + $0x1f0] sm:$0xff]
      %v944 = vld [vmem:[%s2 + $0x1f8] sm:$0xff]
      %v1009 = vunpack.c.l.b16 %v881
      %v1010 = vunpack.c.h.b16 %v881
      %v1011 = vunpack.c.l.b16 %v882
      %v1012 = vunpack.c.h.b16 %v882
      %v1013 = vunpack.c.l.b16 %v883
      %v1014 = vunpack.c.h.b16 %v883
      %v1015 = vunpack.c.l.b16 %v884
      %v1016 = vunpack.c.h.b16 %v884
      %v1017 = vunpack.c.l.b16 %v885
      %v1018 = vunpack.c.h.b16 %v885
      %v1019 = vunpack.c.l.b16 %v886
      %v1020 = vunpack.c.h.b16 %v886
      %v1021 = vunpack.c.l.b16 %v887
      %v1022 = vunpack.c.h.b16 %v887
      %v1023 = vunpack.c.l.b16 %v888
      %v1024 = vunpack.c.h.b16 %v888
      %v1025 = vunpack.c.l.b16 %v889
      %v1026 = vunpack.c.h.b16 %v889
      %v1027 = vunpack.c.l.b16 %v890
      %v1028 = vunpack.c.h.b16 %v890
      %v1029 = vunpack.c.l.b16 %v891
      %v1030 = vunpack.c.h.b16 %v891
      %v1031 = vunpack.c.l.b16 %v892
      %v1032 = vunpack.c.h.b16 %v892
      %v1033 = vunpack.c.l.b16 %v893
      %v1034 = vunpack.c.h.b16 %v893
      %v1035 = vunpack.c.l.b16 %v894
      %v1036 = vunpack.c.h.b16 %v894
      %v1037 = vunpack.c.l.b16 %v895
      %v1038 = vunpack.c.h.b16 %v895
      %v1039 = vunpack.c.l.b16 %v896
      %v1040 = vunpack.c.h.b16 %v896
      %v1041 = vunpack.c.l.b16 %v897
      %v1042 = vunpack.c.h.b16 %v897
      %v1043 = vunpack.c.l.b16 %v898
      %v1044 = vunpack.c.h.b16 %v898
      %v1045 = vunpack.c.l.b16 %v899
      %v1046 = vunpack.c.h.b16 %v899
      %v1047 = vunpack.c.l.b16 %v900
      %v1048 = vunpack.c.h.b16 %v900
      %v1049 = vunpack.c.l.b16 %v901
      %v1050 = vunpack.c.h.b16 %v901
      %v1051 = vunpack.c.l.b16 %v902
      %v1052 = vunpack.c.h.b16 %v902
      %v1053 = vunpack.c.l.b16 %v903
      %v1054 = vunpack.c.h.b16 %v903
      %v1055 = vunpack.c.l.b16 %v904
      %v1056 = vunpack.c.h.b16 %v904
      %v1057 = vunpack.c.l.b16 %v905
      %v1058 = vunpack.c.h.b16 %v905
      %v1059 = vunpack.c.l.b16 %v906
      %v1060 = vunpack.c.h.b16 %v906
      %v1061 = vunpack.c.l.b16 %v907
      %v1062 = vunpack.c.h.b16 %v907
      %v1063 = vunpack.c.l.b16 %v908
      %v1064 = vunpack.c.h.b16 %v908
      %v1065 = vunpack.c.l.b16 %v909
      %v1066 = vunpack.c.h.b16 %v909
      %v1067 = vunpack.c.l.b16 %v910
      %v1068 = vunpack.c.h.b16 %v910
      %v1069 = vunpack.c.l.b16 %v911
      %v1070 = vunpack.c.h.b16 %v911
      %v1071 = vunpack.c.l.b16 %v912
      %v1072 = vunpack.c.h.b16 %v912
      %v1073 = vunpack.c.l.b16 %v913
      %v1074 = vunpack.c.h.b16 %v913
      %v1075 = vunpack.c.l.b16 %v914
      %v1076 = vunpack.c.h.b16 %v914
      %v1077 = vunpack.c.l.b16 %v915
      %v1078 = vunpack.c.h.b16 %v915
      %v1079 = vunpack.c.l.b16 %v916
      %v1080 = vunpack.c.h.b16 %v916
      %v1081 = vunpack.c.l.b16 %v917
      %v1082 = vunpack.c.h.b16 %v917
      %v1083 = vunpack.c.l.b16 %v918
      %v1084 = vunpack.c.h.b16 %v918
      %v1085 = vunpack.c.l.b16 %v919
      %v1086 = vunpack.c.h.b16 %v919
      %v1087 = vunpack.c.l.b16 %v920
      %v1088 = vunpack.c.h.b16 %v920
      %v1089 = vunpack.c.l.b16 %v921
      %v1090 = vunpack.c.h.b16 %v921
      %v1091 = vunpack.c.l.b16 %v922
      %v1092 = vunpack.c.h.b16 %v922
      %v1093 = vunpack.c.l.b16 %v923
      %v1094 = vunpack.c.h.b16 %v923
      %v1095 = vunpack.c.l.b16 %v924
      %v1096 = vunpack.c.h.b16 %v924
      %v1097 = vunpack.c.l.b16 %v925
      %v1098 = vunpack.c.h.b16 %v925
      %v1099 = vunpack.c.l.b16 %v926
      %v1100 = vunpack.c.h.b16 %v926
      %v1101 = vunpack.c.l.b16 %v927
      %v1102 = vunpack.c.h.b16 %v927
      %v1103 = vunpack.c.l.b16 %v928
      %v1104 = vunpack.c.h.b16 %v928
      %v1105 = vunpack.c.l.b16 %v929
      %v1106 = vunpack.c.h.b16 %v929
      %v1107 = vunpack.c.l.b16 %v930
      %v1108 = vunpack.c.h.b16 %v930
      %v1109 = vunpack.c.l.b16 %v931
      %v1110 = vunpack.c.h.b16 %v931
      %v1111 = vunpack.c.l.b16 %v932
      %v1112 = vunpack.c.h.b16 %v932
      %v1113 = vunpack.c.l.b16 %v933
      %v1114 = vunpack.c.h.b16 %v933
      %v1115 = vunpack.c.l.b16 %v934
      %v1116 = vunpack.c.h.b16 %v934
      %v1117 = vunpack.c.l.b16 %v935
      %v1118 = vunpack.c.h.b16 %v935
      %v1119 = vunpack.c.l.b16 %v936
      %v1120 = vunpack.c.h.b16 %v936
      %v1121 = vunpack.c.l.b16 %v937
      %v1122 = vunpack.c.h.b16 %v937
      %v1123 = vunpack.c.l.b16 %v938
      %v1124 = vunpack.c.h.b16 %v938
      %v1125 = vunpack.c.l.b16 %v939
      %v1126 = vunpack.c.h.b16 %v939
      %v1127 = vunpack.c.l.b16 %v940
      %v1128 = vunpack.c.h.b16 %v940
      %v1129 = vunpack.c.l.b16 %v941
      %v1130 = vunpack.c.h.b16 %v941
      %v1131 = vunpack.c.l.b16 %v942
      %v1132 = vunpack.c.h.b16 %v942
      %v1133 = vunpack.c.l.b16 %v943
      %v1134 = vunpack.c.h.b16 %v943
      %v1135 = vunpack.c.l.b16 %v944
      %v1136 = vunpack.c.h.b16 %v944
      %v1137 = vpack.c.b16 %v1011, %v1009
      %v1138 = vpack.c.b16 %v1012, %v1010
      %v1139 = vpack.c.b16 %v1015, %v1013
      %v1140 = vpack.c.b16 %v1016, %v1014
      %v1141 = vpack.c.b16 %v1019, %v1017
      %v1142 = vpack.c.b16 %v1020, %v1018
      %v1143 = vpack.c.b16 %v1023, %v1021
      %v1144 = vpack.c.b16 %v1024, %v1022
      %v1145 = vpack.c.b16 %v1027, %v1025
      %v1146 = vpack.c.b16 %v1028, %v1026
      %v1147 = vpack.c.b16 %v1031, %v1029
      %v1148 = vpack.c.b16 %v1032, %v1030
      %v1149 = vpack.c.b16 %v1035, %v1033
      %v1150 = vpack.c.b16 %v1036, %v1034
      %v1151 = vpack.c.b16 %v1039, %v1037
      %v1152 = vpack.c.b16 %v1040, %v1038
      %v1153 = vpack.c.b16 %v1043, %v1041
      %v1154 = vpack.c.b16 %v1044, %v1042
      %v1155 = vpack.c.b16 %v1047, %v1045
      %v1156 = vpack.c.b16 %v1048, %v1046
      %v1157 = vpack.c.b16 %v1051, %v1049
      %v1158 = vpack.c.b16 %v1052, %v1050
      %v1159 = vpack.c.b16 %v1055, %v1053
      %v1160 = vpack.c.b16 %v1056, %v1054
      %v1161 = vpack.c.b16 %v1059, %v1057
      %v1162 = vpack.c.b16 %v1060, %v1058
      %v1163 = vpack.c.b16 %v1063, %v1061
      %v1164 = vpack.c.b16 %v1064, %v1062
      %v1165 = vpack.c.b16 %v1067, %v1065
      %v1166 = vpack.c.b16 %v1068, %v1066
      %v1167 = vpack.c.b16 %v1071, %v1069
      %v1168 = vpack.c.b16 %v1072, %v1070
      %v1169 = vpack.c.b16 %v1075, %v1073
      %v1170 = vpack.c.b16 %v1076, %v1074
      %v1171 = vpack.c.b16 %v1079, %v1077
      %v1172 = vpack.c.b16 %v1080, %v1078
      %v1173 = vpack.c.b16 %v1083, %v1081
      %v1174 = vpack.c.b16 %v1084, %v1082
      %v1175 = vpack.c.b16 %v1087, %v1085
      %v1176 = vpack.c.b16 %v1088, %v1086
      %v1177 = vpack.c.b16 %v1091, %v1089
      %v1178 = vpack.c.b16 %v1092, %v1090
      %v1179 = vpack.c.b16 %v1095, %v1093
      %v1180 = vpack.c.b16 %v1096, %v1094
      %v1181 = vpack.c.b16 %v1099, %v1097
      %v1182 = vpack.c.b16 %v1100, %v1098
      %v1183 = vpack.c.b16 %v1103, %v1101
      %v1184 = vpack.c.b16 %v1104, %v1102
      %v1185 = vpack.c.b16 %v1107, %v1105
      %v1186 = vpack.c.b16 %v1108, %v1106
      %v1187 = vpack.c.b16 %v1111, %v1109
      %v1188 = vpack.c.b16 %v1112, %v1110
      %v1189 = vpack.c.b16 %v1115, %v1113
      %v1190 = vpack.c.b16 %v1116, %v1114
      %v1191 = vpack.c.b16 %v1119, %v1117
      %v1192 = vpack.c.b16 %v1120, %v1118
      %v1193 = vpack.c.b16 %v1123, %v1121
      %v1194 = vpack.c.b16 %v1124, %v1122
      %v1195 = vpack.c.b16 %v1127, %v1125
      %v1196 = vpack.c.b16 %v1128, %v1126
      %v1197 = vpack.c.b16 %v1131, %v1129
      %v1198 = vpack.c.b16 %v1132, %v1130
      %v1199 = vpack.c.b16 %v1135, %v1133
      %v1200 = vpack.c.b16 %v1136, %v1134
      %1265 = vmatprep.subr.bf16.mxu0 %v1138
      %1266 = vmatpush1.bf16.msra.mxu0 %v1137
      %1267 = vmatprep.subr.bf16.mxu0 %v1140
      %1268 = vmatpush1.bf16.msra.mxu0 %v1139
      %1269 = vmatprep.subr.bf16.mxu0 %v1142
      %1270 = vmatpush1.bf16.msra.mxu0 %v1141
      %1271 = vmatprep.subr.bf16.mxu0 %v1144
      %1272 = vmatpush1.bf16.msra.mxu0 %v1143
      %1273 = vmatprep.subr.bf16.mxu0 %v1146
      %1274 = vmatpush1.bf16.msra.mxu0 %v1145
      %1275 = vmatprep.subr.bf16.mxu0 %v1148
      %1276 = vmatpush1.bf16.msra.mxu0 %v1147
      %1277 = vmatprep.subr.bf16.mxu0 %v1150
      %1278 = vmatpush1.bf16.msra.mxu0 %v1149
      %1279 = vmatprep.subr.bf16.mxu0 %v1152
      %1280 = vmatpush1.bf16.msra.mxu0 %v1151
      %1281 = vmatprep.subr.bf16.mxu0 %v1154
      %1282 = vmatpush1.bf16.msra.mxu0 %v1153
      %1283 = vmatprep.subr.bf16.mxu0 %v1156
      %1284 = vmatpush1.bf16.msra.mxu0 %v1155
      %1285 = vmatprep.subr.bf16.mxu0 %v1158
      %1286 = vmatpush1.bf16.msra.mxu0 %v1157
      %1287 = vmatprep.subr.bf16.mxu0 %v1160
      %1288 = vmatpush1.bf16.msra.mxu0 %v1159
      %1289 = vmatprep.subr.bf16.mxu0 %v1162
      %1290 = vmatpush1.bf16.msra.mxu0 %v1161
      %1291 = vmatprep.subr.bf16.mxu0 %v1164
      %1292 = vmatpush1.bf16.msra.mxu0 %v1163
      %1293 = vmatprep.subr.bf16.mxu0 %v1166
      %1294 = vmatpush1.bf16.msra.mxu0 %v1165
      %1295 = vmatprep.subr.bf16.mxu0 %v1168
      %1296 = vmatpush1.bf16.msra.mxu0 %v1167
      %1297 = vmatprep.mubr.bf16.mxu0 %v874
      %1298 = vmatmul.mubr.bf16.gmra.mrb[0].mxu0 %v873
      %v1299 = vpop.f32.mrb[0].mxu0
      %v1300 = vadd.f32 0.0, %v1299
      %v1301 = vpop.f32.mrb[0].mxu0
      %v1302 = vadd.f32 0.0, %v1301
      %v1303 = vpop.f32.mrb[0].mxu0
      %v1304 = vadd.f32 0.0, %v1303
      %v1305 = vpop.f32.mrb[0].mxu0
      %v1306 = vadd.f32 0.0, %v1305
      %1307 = vmatprep.mubr.bf16.mxu0 %v878
      %1308 = vmatmul.mubr.bf16.gmra.mrb[0].mxu0 %v877
      %v1309 = vpop.f32.mrb[0].mxu0
      %v1310 = vadd.f32 0.0, %v1309
      %v1311 = vpop.f32.mrb[0].mxu0
      %v1312 = vadd.f32 0.0, %v1311
      %v1313 = vpop.f32.mrb[0].mxu0
      %v1314 = vadd.f32 0.0, %v1313
      %v1315 = vpop.f32.mrb[0].mxu0
      %v1316 = vadd.f32 0.0, %v1315
      %1317 = vdwg.mxu0
      %1318 = vmatprep.subr.bf16.mxu0 %v1170
      %1319 = vmatpush1.bf16.msra.mxu0 %v1169
      %1320 = vmatprep.subr.bf16.mxu0 %v1172
      %1321 = vmatpush1.bf16.msra.mxu0 %v1171
      %1322 = vmatprep.subr.bf16.mxu0 %v1174
      %1323 = vmatpush1.bf16.msra.mxu0 %v1173
      %1324 = vmatprep.subr.bf16.mxu0 %v1176
      %1325 = vmatpush1.bf16.msra.mxu0 %v1175
      %1326 = vmatprep.subr.bf16.mxu0 %v1178
      %1327 = vmatpush1.bf16.msra.mxu0 %v1177
      %1328 = vmatprep.subr.bf16.mxu0 %v1180
      %1329 = vmatpush1.bf16.msra.mxu0 %v1179
      %1330 = vmatprep.subr.bf16.mxu0 %v1182
      %1331 = vmatpush1.bf16.msra.mxu0 %v1181
      %1332 = vmatprep.subr.bf16.mxu0 %v1184
      %1333 = vmatpush1.bf16.msra.mxu0 %v1183
      %1334 = vmatprep.subr.bf16.mxu0 %v1186
      %1335 = vmatpush1.bf16.msra.mxu0 %v1185
      %1336 = vmatprep.subr.bf16.mxu0 %v1188
      %1337 = vmatpush1.bf16.msra.mxu0 %v1187
      %1338 = vmatprep.subr.bf16.mxu0 %v1190
      %1339 = vmatpush1.bf16.msra.mxu0 %v1189
      %1340 = vmatprep.subr.bf16.mxu0 %v1192
      %1341 = vmatpush1.bf16.msra.mxu0 %v1191
      %1342 = vmatprep.subr.bf16.mxu0 %v1194
      %1343 = vmatpush1.bf16.msra.mxu0 %v1193
      %1344 = vmatprep.subr.bf16.mxu0 %v1196
      %1345 = vmatpush1.bf16.msra.mxu0 %v1195
      %1346 = vmatprep.subr.bf16.mxu0 %v1198
      %1347 = vmatpush1.bf16.msra.mxu0 %v1197
      %1348 = vmatprep.subr.bf16.mxu0 %v1200
      %1349 = vmatpush1.bf16.msra.mxu0 %v1199
      %1350 = vmatprep.mubr.bf16.mxu0 %v876
      %1351 = vmatmul.mubr.bf16.gmra.mrb[0].mxu0 %v875
      %v1352 = vpop.f32.mrb[0].mxu0
      %v1353 = vadd.f32 %v1300, %v1352
      %v1354 = vpop.f32.mrb[0].mxu0
      %v1355 = vadd.f32 %v1302, %v1354
      %v1356 = vpop.f32.mrb[0].mxu0
      %v1357 = vadd.f32 %v1304, %v1356
      %v1358 = vpop.f32.mrb[0].mxu0
      %v1359 = vadd.f32 %v1306, %v1358
      %1360 = vmatprep.mubr.bf16.mxu0 %v880
      %1361 = vmatmul.mubr.bf16.gmra.mrb[0].mxu0 %v879
      %v1362 = vpop.f32.mrb[0].mxu0
      %v1363 = vadd.f32 %v1310, %v1362
      %v1364 = vpop.f32.mrb[0].mxu0
      %v1365 = vadd.f32 %v1312, %v1364
      %v1366 = vpop.f32.mrb[0].mxu0
      %v1367 = vadd.f32 %v1314, %v1366
      %v1368 = vpop.f32.mrb[0].mxu0
      %v1369 = vadd.f32 %v1316, %v1368
      %1370 = vdwg.mxu0
      %1371 = vst [vmem:[%s304] sm:$0xff] %v1353
      %1372 = vst [vmem:[%s304 + $0x8] sm:$0xff] %v1355
      %1373 = vst [vmem:[%s304 + $0x10] sm:$0xff] %v1357
      %1374 = vst [vmem:[%s304 + $0x18] sm:$0xff] %v1359
      %1375 = vst [vmem:[%s304 + $0x20] sm:$0xff] %v1363
      %1376 = vst [vmem:[%s304 + $0x28] sm:$0xff] %v1365
      %1377 = vst [vmem:[%s304 + $0x30] sm:$0xff] %v1367
      %1378 = vst [vmem:[%s304 + $0x38] sm:$0xff] %v1369
      %s1379 = sadd.s32 %s21, %s20
      %s1380 = smul.u32 4, %s1379
      %p1381 = scmp.lt.s32.totalorder %s1380, 7
      %s1382 = scalar_select %p1381, %s1380, 7
      %s1383 = smul.addr %s1382, 2
      %s1384 = smul.addr %s1383, 8
      %s1385 = scalar_lea.vmem %s5, %s1384
      // Predicated region
      $region41: #{global_filter.1} parent=39 // pred_check
        %p1386 = pneg %p170
      $region42: #{global_filter.1} parent=39 // pred_check_branch
        %1388 = sbr.rel (%p1386) target = $region44
      $region43: #{global_filter.1} parent=39 // pred_region
        %s1389 = sadd.s32 %s21, %s20
        %s1390 = smul.u32 4, %s1389
      $region44: #{global_filter.1} parent=39 // pred_fallthru
        _
    $region40: #{global_filter.1} parent=5 // pred_fallthru
      _
    %p1391 = scmp.le.s32.totalorder 2, %s11
    // Predicated region
    $region45: #{global_filter.1} parent=5 // pred_check
      %p1392 = pneg %p1391
    $region46: #{global_filter.1} parent=5 // pred_check_branch
      %1394 = sbr.rel (%p1392) target = $region48
    $region47: #{global_filter.1} parent=5 // pred_region
      %s1395 = ssub.s32 %s11, 2
      // Predicated region
      $region49: #{global_filter.1} parent=47 // pred_check
        %p1396 = pneg %p176
      $region50: #{global_filter.1} parent=47 // pred_check_branch
        %1398 = sbr.rel (%p1396) target = $region52
      $region51: #{global_filter.1} parent=47 // pred_region
        %s1399 = sadd.s32 %s23, %s22
        %s1400 = smul.u32 4, %s1399
        %p1401 = scmp.lt.s32.totalorder %s1400, 7
        %s1402 = scalar_select %p1401, %s1400, 7
        %s1403 = smul.addr %s1402, 2
        %s1404 = smul.addr %s1403, 8
        %s1405 = scalar_lea.vmem %s5, %s1404
      $region52: #{global_filter.1} parent=47 // pred_fallthru
        _
    $region48: #{global_filter.1} parent=5 // pred_fallthru
      _
  $region6: #{global_filter.1} parent=0 // loop_footer
    %s15 = sadd.s32 1, %s11
  $region7: #{global_filter.1} parent=0 // loop_footer_branch
    %10 = sbr.rel target = $region3
  $region8: #{global_filter.1} parent=0 // loop_exit
    _

</llo_original>
